<compile_context>
chip_gen: v6e
topology: v6e:2x2x1
jax: 0.10.0
libtpu: 0.0.40
codegen_flags: <defaults>
</compile_context>

<pallas_src>
import jax
import jax.numpy as jnp
from jax.experimental import pallas as pl
from jax.experimental.pallas import tpu as pltpu


def _gtconv_kernel(w_ref, a_ref, o_ref):
    # w_ref: SMEM (C_out, C_in) softmax-normalized weights (scalar reads)
    # a_ref: VMEM (C_in, TM, N)  row-slab of the adjacency stack
    # o_ref: VMEM (C_out, TM, N)
    c_out, c_in = w_ref.shape
    for o in range(c_out):                        # tiny, fully unrolled VPU MAC
        acc = w_ref[o, 0] * a_ref[0].astype(jnp.float32)
        for c in range(1, c_in):
            acc = acc + w_ref[o, c] * a_ref[c].astype(jnp.float32)
        o_ref[o] = acc.astype(o_ref.dtype)


def _auto_block_rows(c_in, c_out, n1, n2, itemsize, vmem_budget_bytes=8 << 20):
    # Per grid step (double-buffered): input slab 2*c_in*tm*n2 + output slab
    # 2*c_out*tm*n2 bytes.  Pick the largest tm under the budget, rounded to a
    # multiple of 8 (sublane constraint) unless it covers the full row extent.
    bytes_per_row = 2 * (c_in + c_out) * n2 * itemsize
    tm = max(1, vmem_budget_bytes // max(bytes_per_row, 1))
    if tm >= n1:
        return n1
    tm = max(8, (tm // 8) * 8)
    return min(tm, n1)


def gtconv_forward(A, weight, *, block_rows=None):
    """A: (C_in, N, N); weight: (C_out, C_in, 1, 1). Returns (C_out, N, N)."""
    c_in, n1, n2 = A.shape
    c_out = weight.shape[0]

    # softmax over in_channels, computed once outside the kernel (tiny)
    w_soft = jax.nn.softmax(weight.reshape(c_out, c_in).astype(jnp.float32), axis=1)

    if block_rows is None:
        tm = _auto_block_rows(c_in, c_out, n1, n2, jnp.dtype(A.dtype).itemsize)
    else:
        tm = min(block_rows, n1)
        # second-to-last block dim must be a multiple of 8 or the full extent
        if tm != n1 and tm % 8 != 0:
            tm = max(8, (tm // 8) * 8)
            tm = min(tm, n1)

    grid = (pl.cdiv(n1, tm),)          # Pallas masks the (harmless) tail block

    cost = pl.CostEstimate(
        flops=2 * c_out * c_in * n1 * n2,
        transcendentals=0,
        bytes_accessed=(c_in + c_out) * n1 * n2 * jnp.dtype(A.dtype).itemsize,
    )

    out = pl.pallas_call(
        _gtconv_kernel,
        out_shape=jax.ShapeDtypeStruct((c_out, n1, n2), A.dtype),
        grid_spec=pltpu.PrefetchScalarGridSpec(
            num_scalar_prefetch=0,
            grid=grid,
            in_specs=[
                # small softmaxed weight matrix, resident in SMEM (scalar reads)
                pl.BlockSpec(memory_space=pltpu.MemorySpace.SMEM),
                # lane-dense row slab of A in its original 3-D layout
                pl.BlockSpec((c_in, tm, n2), lambda i: (0, i, 0)),
            ],
            out_specs=pl.BlockSpec((c_out, tm, n2), lambda i: (0, i, 0)),
        ),
        compiler_params=pltpu.CompilerParams(
            dimension_semantics=("parallel",)),
        cost_estimate=cost,
    )(w_soft, A)

    return out


def gtconv_reference(A, weight):
    w_soft = jax.nn.softmax(weight.reshape(weight.shape[0], weight.shape[1]), axis=1)
    return jnp.einsum("oc,cij->oij", w_soft, A)


if __name__ == "__main__":
    in_channels = 4
    out_channels = 2
    N = 64

    key = jax.random.PRNGKey(0)
    A = jax.random.uniform(key, (in_channels, N, N), dtype=jnp.float32)

    # deterministic parameter init matching GTConv.reset_parameters()
    weight = jnp.full((out_channels, in_channels, 1, 1), 0.1, dtype=jnp.float32)
    scale = jnp.array([0.1], dtype=jnp.float32)  # present in module, unused in forward

    ref = gtconv_reference(A, weight)

    # default auto-sized block (single grid step at this small N)
    out = jax.block_until_ready(gtconv_forward(A, weight))
    assert out.shape == (out_channels, N, N)
    assert jnp.allclose(out, ref, atol=1e-5, rtol=1e-5)

    # explicit smaller row-tile to exercise a multi-step grid + tail handling
    out_tiled = jax.block_until_ready(gtconv_forward(A, weight, block_rows=16))
    assert jnp.allclose(out_tiled, ref, atol=1e-5, rtol=1e-5)

    print("KERNEL_OK")
</pallas_src>

<mosaic_0001>
module attributes {stable_mosaic.version = 11 : i64} {
  func.func @_gtconv_kernel(%arg0: i32, %arg1: memref<2x4xf32, #tpu.memory_space<smem>>, %arg2: memref<4x64x64xf32, #tpu.memory_space<vmem>>, %arg3: memref<2x64x64xf32, #tpu.memory_space<vmem>>) attributes {dimension_semantics = [#tpu.dimension_semantics<parallel>], iteration_bounds = array<i64: 1>, scalar_prefetch = 0 : i64, scratch_operands = 0 : i64, tpu.core_type = #tpu.core_type<tc>, window_params = [{transform_indices = @transform_0, window_bounds = array<i64: 2, 4>}, {transform_indices = @transform_1, window_bounds = array<i64: 4, 64, 64>}, {transform_indices = @transform_2, window_bounds = array<i64: 2, 64, 64>}]} {
    %c0 = arith.constant 0 : index
    %c0_0 = arith.constant 0 : index
    %0 = memref.load %arg1[%c0, %c0_0] : memref<2x4xf32, #tpu.memory_space<smem>>
    %c0_1 = arith.constant 0 : index
    %c0_2 = arith.constant 0 : index
    %c0_3 = arith.constant 0 : index
    %1 = vector.load %arg2[%c0_1, %c0_2, %c0_3] : memref<4x64x64xf32, #tpu.memory_space<vmem>>, vector<1x64x64xf32>
    %2 = vector.shape_cast %1 : vector<1x64x64xf32> to vector<64x64xf32>
    %3 = vector.broadcast %0 : f32 to vector<64x64xf32>
    %4 = arith.mulf %3, %2 : vector<64x64xf32>
    %c0_4 = arith.constant 0 : index
    %c1 = arith.constant 1 : index
    %5 = memref.load %arg1[%c0_4, %c1] : memref<2x4xf32, #tpu.memory_space<smem>>
    %c1_5 = arith.constant 1 : index
    %c0_6 = arith.constant 0 : index
    %c0_7 = arith.constant 0 : index
    %6 = vector.load %arg2[%c1_5, %c0_6, %c0_7] : memref<4x64x64xf32, #tpu.memory_space<vmem>>, vector<1x64x64xf32>
    %7 = vector.shape_cast %6 : vector<1x64x64xf32> to vector<64x64xf32>
    %8 = vector.broadcast %5 : f32 to vector<64x64xf32>
    %9 = arith.mulf %8, %7 : vector<64x64xf32>
    %10 = arith.addf %4, %9 : vector<64x64xf32>
    %c0_8 = arith.constant 0 : index
    %c2 = arith.constant 2 : index
    %11 = memref.load %arg1[%c0_8, %c2] : memref<2x4xf32, #tpu.memory_space<smem>>
    %c2_9 = arith.constant 2 : index
    %c0_10 = arith.constant 0 : index
    %c0_11 = arith.constant 0 : index
    %12 = vector.load %arg2[%c2_9, %c0_10, %c0_11] : memref<4x64x64xf32, #tpu.memory_space<vmem>>, vector<1x64x64xf32>
    %13 = vector.shape_cast %12 : vector<1x64x64xf32> to vector<64x64xf32>
    %14 = vector.broadcast %11 : f32 to vector<64x64xf32>
    %15 = arith.mulf %14, %13 : vector<64x64xf32>
    %16 = arith.addf %10, %15 : vector<64x64xf32>
    %c0_12 = arith.constant 0 : index
    %c3 = arith.constant 3 : index
    %17 = memref.load %arg1[%c0_12, %c3] : memref<2x4xf32, #tpu.memory_space<smem>>
    %c3_13 = arith.constant 3 : index
    %c0_14 = arith.constant 0 : index
    %c0_15 = arith.constant 0 : index
    %18 = vector.load %arg2[%c3_13, %c0_14, %c0_15] : memref<4x64x64xf32, #tpu.memory_space<vmem>>, vector<1x64x64xf32>
    %19 = vector.shape_cast %18 : vector<1x64x64xf32> to vector<64x64xf32>
    %20 = vector.broadcast %17 : f32 to vector<64x64xf32>
    %21 = arith.mulf %20, %19 : vector<64x64xf32>
    %22 = arith.addf %16, %21 : vector<64x64xf32>
    %c0_16 = arith.constant 0 : index
    %c0_17 = arith.constant 0 : index
    %c0_18 = arith.constant 0 : index
    %23 = vector.load %arg3[%c0_16, %c0_17, %c0_18] : memref<2x64x64xf32, #tpu.memory_space<vmem>>, vector<1x64x64xf32>
    %24 = vector.shape_cast %23 : vector<1x64x64xf32> to vector<64x64xf32>
    %25 = vector.shape_cast %22 : vector<64x64xf32> to vector<1x64x64xf32>
    tpu.vector_store %arg3[%c0_16, %c0_17, %c0_18], %25 {strides = array<i32>} : memref<2x64x64xf32, #tpu.memory_space<vmem>>, vector<1x64x64xf32>,
    %c1_19 = arith.constant 1 : index
    %c0_20 = arith.constant 0 : index
    %26 = memref.load %arg1[%c1_19, %c0_20] : memref<2x4xf32, #tpu.memory_space<smem>>
    %c0_21 = arith.constant 0 : index
    %c0_22 = arith.constant 0 : index
    %c0_23 = arith.constant 0 : index
    %27 = vector.load %arg2[%c0_21, %c0_22, %c0_23] : memref<4x64x64xf32, #tpu.memory_space<vmem>>, vector<1x64x64xf32>
    %28 = vector.shape_cast %27 : vector<1x64x64xf32> to vector<64x64xf32>
    %29 = vector.broadcast %26 : f32 to vector<64x64xf32>
    %30 = arith.mulf %29, %28 : vector<64x64xf32>
    %c1_24 = arith.constant 1 : index
    %c1_25 = arith.constant 1 : index
    %31 = memref.load %arg1[%c1_24, %c1_25] : memref<2x4xf32, #tpu.memory_space<smem>>
    %c1_26 = arith.constant 1 : index
    %c0_27 = arith.constant 0 : index
    %c0_28 = arith.constant 0 : index
    %32 = vector.load %arg2[%c1_26, %c0_27, %c0_28] : memref<4x64x64xf32, #tpu.memory_space<vmem>>, vector<1x64x64xf32>
    %33 = vector.shape_cast %32 : vector<1x64x64xf32> to vector<64x64xf32>
    %34 = vector.broadcast %31 : f32 to vector<64x64xf32>
    %35 = arith.mulf %34, %33 : vector<64x64xf32>
    %36 = arith.addf %30, %35 : vector<64x64xf32>
    %c1_29 = arith.constant 1 : index
    %c2_30 = arith.constant 2 : index
    %37 = memref.load %arg1[%c1_29, %c2_30] : memref<2x4xf32, #tpu.memory_space<smem>>
    %c2_31 = arith.constant 2 : index
    %c0_32 = arith.constant 0 : index
    %c0_33 = arith.constant 0 : index
    %38 = vector.load %arg2[%c2_31, %c0_32, %c0_33] : memref<4x64x64xf32, #tpu.memory_space<vmem>>, vector<1x64x64xf32>
    %39 = vector.shape_cast %38 : vector<1x64x64xf32> to vector<64x64xf32>
    %40 = vector.broadcast %37 : f32 to vector<64x64xf32>
    %41 = arith.mulf %40, %39 : vector<64x64xf32>
    %42 = arith.addf %36, %41 : vector<64x64xf32>
    %c1_34 = arith.constant 1 : index
    %c3_35 = arith.constant 3 : index
    %43 = memref.load %arg1[%c1_34, %c3_35] : memref<2x4xf32, #tpu.memory_space<smem>>
    %c3_36 = arith.constant 3 : index
    %c0_37 = arith.constant 0 : index
    %c0_38 = arith.constant 0 : index
    %44 = vector.load %arg2[%c3_36, %c0_37, %c0_38] : memref<4x64x64xf32, #tpu.memory_space<vmem>>, vector<1x64x64xf32>
    %45 = vector.shape_cast %44 : vector<1x64x64xf32> to vector<64x64xf32>
    %46 = vector.broadcast %43 : f32 to vector<64x64xf32>
    %47 = arith.mulf %46, %45 : vector<64x64xf32>
    %48 = arith.addf %42, %47 : vector<64x64xf32>
    %c1_39 = arith.constant 1 : index
    %c0_40 = arith.constant 0 : index
    %c0_41 = arith.constant 0 : index
    %49 = vector.load %arg3[%c1_39, %c0_40, %c0_41] : memref<2x64x64xf32, #tpu.memory_space<vmem>>, vector<1x64x64xf32>
    %50 = vector.shape_cast %49 : vector<1x64x64xf32> to vector<64x64xf32>
    %51 = vector.shape_cast %48 : vector<64x64xf32> to vector<1x64x64xf32>
    tpu.vector_store %arg3[%c1_39, %c0_40, %c0_41], %51 {strides = array<i32>} : memref<2x64x64xf32, #tpu.memory_space<vmem>>, vector<1x64x64xf32>,
    return
  }
  func.func @transform_0(%arg0: i32) -> (i32, i32) {
    %c0_i32 = arith.constant 0 : i32
    %c0_i32_0 = arith.constant 0 : i32
    %c0_i32_1 = arith.constant 0 : i32
    return %c0_i32, %c0_i32_0 : i32, i32
  }
  func.func @transform_1(%arg0: i32) -> (i32, i32, i32) {
    %c0_i32 = arith.constant 0 : i32
    %c0_i32_0 = arith.constant 0 : i32
    %c0_i32_1 = arith.constant 0 : i32
    return %c0_i32, %arg0, %c0_i32_0 : i32, i32, i32
  }
  func.func @transform_2(%arg0: i32) -> (i32, i32, i32) {
    %c0_i32 = arith.constant 0 : i32
    %c0_i32_0 = arith.constant 0 : i32
    %c0_i32_1 = arith.constant 0 : i32
    return %c0_i32, %arg0, %c0_i32_0 : i32, i32, i32
  }
}

</mosaic_0001>

<llo_original>
// kernel: tpu_custom_call.1
$region0: #{tpu_custom_call.1}
  #allocation0 [shape = 'u32[]', space=smem, size = 0x4, offset = 0x4, fixed_abs, tag = 'smem constant byte address 0x4 - core index']
  #allocation1 [shape = 'u32[144,128]{1,0:T(1,128)}', space=vmem, size = 0x12000, scoped, tag = 'internal scratch']
  %s0 = inlined_call_operand.hbm [shape: f32[2,4], index: 0, kind: input, shape index: {}]
  %s1 = inlined_call_operand.hbm [shape: f32[4,64,64], index: 1, kind: input, shape index: {}]
  %s2 = inlined_call_operand.hbm [shape: f32[2,64,64], index: 2, kind: output, shape index: {}]
  %s3 = sld [smem:[#allocation0]]
  $region26: #{tpu_custom_call.1} parent=0
    _
  %s5 = ssub.s32 1, %s3
  %s6 = scalar_select 0, %s5, %s3
  $region1: #{tpu_custom_call.1} parent=0
    #allocation2 [shape = 'u8[1024]{0}', space=smem, size = 0x400, scoped, tag = 'input window, operand 0, single buffered']
    #allocation3 [shape = 's32[1]{0}', space=sflag, size = 0x4, scoped, tag = 'scoped memory for tpu_custom_call.1']
    #allocation4 [shape = 's32[1]{0}', space=sflag, size = 0x4, scoped, tag = 'scoped memory for tpu_custom_call.1']
    #allocation5 [shape = 's32[1]{0}', space=sflag, size = 0x4, scoped, tag = 'scoped memory for tpu_custom_call.1']
    #allocation6 [shape = 'u8[131072]{0}', space=vmem, size = 0x20000, scoped, tag = 'input window, operand 1, single buffered']
    #allocation7 [shape = 'u8[65536]{0}', space=vmem, size = 0x10000, scoped, tag = 'output window, operand 0, single buffered']
    %7 = vsyncpa [#allocation5], 0
    %8 = vsyncpa [#allocation3], 0
    %9 = vsyncpa [#allocation4], 0
    // Predicated region
    $region2: #{tpu_custom_call.1} parent=1 // pred_check
      _
    $region3: #{tpu_custom_call.1} parent=1 // pred_check_branch
      %11 = sbr.rel (0) target = $region5
    $region4: #{tpu_custom_call.1} parent=1 // pred_region
      %s13 = ssub.s32 32, 32
      %14 = vsyncadd [#allocation5], %s13
      %17 = dma.hbm_to_smem %s0, 32, [#allocation2], [#allocation5]
    $region5: #{tpu_custom_call.1} parent=1 // pred_fallthru
      _
    // Predicated region
    $region6: #{tpu_custom_call.1} parent=1 // pred_check
      _
    $region7: #{tpu_custom_call.1} parent=1 // pred_check_branch
      %19 = sbr.rel (0) target = $region9
    $region8: #{tpu_custom_call.1} parent=1 // pred_region
      %s21 = ssub.s32 4096, 4096
      %22 = vsyncadd [#allocation3], %s21
      %s23 = sshll.u32 [#allocation6], 4
      %s24 = int_to_ptr.vmem [resolvable:$true] %s23
      %29 = dma.hbm_to_vmem [thread:$0]  %s1, 4096, %s24, [#allocation3], 128, 128, 8
    $region9: #{tpu_custom_call.1} parent=1 // pred_fallthru
      _
    // Predicated region
    $region10: #{tpu_custom_call.1} parent=1 // pred_check
      _
    $region11: #{tpu_custom_call.1} parent=1 // pred_check_branch
      %31 = sbr.rel (0) target = $region13
    $region12: #{tpu_custom_call.1} parent=1 // pred_region
      %32 = dma.done [#allocation5], 32
    $region13: #{tpu_custom_call.1} parent=1 // pred_fallthru
      _
    // Predicated region
    $region14: #{tpu_custom_call.1} parent=1 // pred_check
      _
    $region15: #{tpu_custom_call.1} parent=1 // pred_check_branch
      %34 = sbr.rel (0) target = $region17
    $region16: #{tpu_custom_call.1} parent=1 // pred_region
      %35 = dma.done [#allocation3], 4096
    $region17: #{tpu_custom_call.1} parent=1 // pred_fallthru
      _
    %36 = sfence
    %s37 = sld [smem:[#allocation2]]
    %v38 = vld [vmem:[#allocation6] sm:$0xff]
    %v39 = vld [vmem:[#allocation6 + $0x8] sm:$0xff]
    %v40 = vld [vmem:[#allocation6 + $0x10] sm:$0xff]
    %v41 = vld [vmem:[#allocation6 + $0x18] sm:$0xff]
    %v42 = vld [vmem:[#allocation6 + $0x20] sm:$0xff]
    %v43 = vld [vmem:[#allocation6 + $0x28] sm:$0xff]
    %v44 = vld [vmem:[#allocation6 + $0x30] sm:$0xff]
    %v45 = vld [vmem:[#allocation6 + $0x38] sm:$0xff]
    %v46 = vstv %s37
    %v47 = vmul.f32 %v46, %v38
    %v48 = vmul.f32 %v46, %v39
    %v49 = vmul.f32 %v46, %v40
    %v50 = vmul.f32 %v46, %v41
    %v51 = vmul.f32 %v46, %v42
    %v52 = vmul.f32 %v46, %v43
    %v53 = vmul.f32 %v46, %v44
    %v54 = vmul.f32 %v46, %v45
    %s55 = sld [smem:[#allocation2 + $0x1]]
    %s56 = scalar_lea.vmem [#allocation6], 64
    %v57 = vld [vmem:[%s56] sm:$0xff]
    %v58 = vld [vmem:[%s56 + $0x8] sm:$0xff]
    %v59 = vld [vmem:[%s56 + $0x10] sm:$0xff]
    %v60 = vld [vmem:[%s56 + $0x18] sm:$0xff]
    %v61 = vld [vmem:[%s56 + $0x20] sm:$0xff]
    %v62 = vld [vmem:[%s56 + $0x28] sm:$0xff]
    %v63 = vld [vmem:[%s56 + $0x30] sm:$0xff]
    %v64 = vld [vmem:[%s56 + $0x38] sm:$0xff]
    %v65 = vstv %s55
    %v66 = vmul.f32 %v65, %v57
    %v67 = vmul.f32 %v65, %v58
    %v68 = vmul.f32 %v65, %v59
    %v69 = vmul.f32 %v65, %v60
    %v70 = vmul.f32 %v65, %v61
    %v71 = vmul.f32 %v65, %v62
    %v72 = vmul.f32 %v65, %v63
    %v73 = vmul.f32 %v65, %v64
    %v74 = vadd.f32 %v47, %v66
    %v75 = vadd.f32 %v48, %v67
    %v76 = vadd.f32 %v49, %v68
    %v77 = vadd.f32 %v50, %v69
    %v78 = vadd.f32 %v51, %v70
    %v79 = vadd.f32 %v52, %v71
    %v80 = vadd.f32 %v53, %v72
    %v81 = vadd.f32 %v54, %v73
    %s82 = sld [smem:[#allocation2 + $0x2]]
    %s83 = scalar_lea.vmem [#allocation6], 128
    %v84 = vld [vmem:[%s83] sm:$0xff]
    %v85 = vld [vmem:[%s83 + $0x8] sm:$0xff]
    %v86 = vld [vmem:[%s83 + $0x10] sm:$0xff]
    %v87 = vld [vmem:[%s83 + $0x18] sm:$0xff]
    %v88 = vld [vmem:[%s83 + $0x20] sm:$0xff]
    %v89 = vld [vmem:[%s83 + $0x28] sm:$0xff]
    %v90 = vld [vmem:[%s83 + $0x30] sm:$0xff]
    %v91 = vld [vmem:[%s83 + $0x38] sm:$0xff]
    %v92 = vstv %s82
    %v93 = vmul.f32 %v92, %v84
    %v94 = vmul.f32 %v92, %v85
    %v95 = vmul.f32 %v92, %v86
    %v96 = vmul.f32 %v92, %v87
    %v97 = vmul.f32 %v92, %v88
    %v98 = vmul.f32 %v92, %v89
    %v99 = vmul.f32 %v92, %v90
    %v100 = vmul.f32 %v92, %v91
    %v101 = vadd.f32 %v74, %v93
    %v102 = vadd.f32 %v75, %v94
    %v103 = vadd.f32 %v76, %v95
    %v104 = vadd.f32 %v77, %v96
    %v105 = vadd.f32 %v78, %v97
    %v106 = vadd.f32 %v79, %v98
    %v107 = vadd.f32 %v80, %v99
    %v108 = vadd.f32 %v81, %v100
    %s109 = sld [smem:[#allocation2 + $0x3]]
    %s110 = scalar_lea.vmem [#allocation6], 192
    %v111 = vld [vmem:[%s110] sm:$0xff]
    %v112 = vld [vmem:[%s110 + $0x8] sm:$0xff]
    %v113 = vld [vmem:[%s110 + $0x10] sm:$0xff]
    %v114 = vld [vmem:[%s110 + $0x18] sm:$0xff]
    %v115 = vld [vmem:[%s110 + $0x20] sm:$0xff]
    %v116 = vld [vmem:[%s110 + $0x28] sm:$0xff]
    %v117 = vld [vmem:[%s110 + $0x30] sm:$0xff]
    %v118 = vld [vmem:[%s110 + $0x38] sm:$0xff]
    %v119 = vstv %s109
    %v120 = vmul.f32 %v119, %v111
    %v121 = vmul.f32 %v119, %v112
    %v122 = vmul.f32 %v119, %v113
    %v123 = vmul.f32 %v119, %v114
    %v124 = vmul.f32 %v119, %v115
    %v125 = vmul.f32 %v119, %v116
    %v126 = vmul.f32 %v119, %v117
    %v127 = vmul.f32 %v119, %v118
    %v128 = vadd.f32 %v101, %v120
    %v129 = vadd.f32 %v102, %v121
    %v130 = vadd.f32 %v103, %v122
    %v131 = vadd.f32 %v104, %v123
    %v132 = vadd.f32 %v105, %v124
    %v133 = vadd.f32 %v106, %v125
    %v134 = vadd.f32 %v107, %v126
    %v135 = vadd.f32 %v108, %v127
    %vm136 = vcmask 523264
    %137 = vst.msk [vmem:[#allocation7] sm:$0xff] %vm136, %v128
    %138 = vst.msk [vmem:[#allocation7 + $0x8] sm:$0xff] %vm136, %v129
    %139 = vst.msk [vmem:[#allocation7 + $0x10] sm:$0xff] %vm136, %v130
    %140 = vst.msk [vmem:[#allocation7 + $0x18] sm:$0xff] %vm136, %v131
    %141 = vst.msk [vmem:[#allocation7 + $0x20] sm:$0xff] %vm136, %v132
    %142 = vst.msk [vmem:[#allocation7 + $0x28] sm:$0xff] %vm136, %v133
    %143 = vst.msk [vmem:[#allocation7 + $0x30] sm:$0xff] %vm136, %v134
    %144 = vst.msk [vmem:[#allocation7 + $0x38] sm:$0xff] %vm136, %v135
    %s145 = sld [smem:[#allocation2 + $0x80]]
    %v146 = vld [vmem:[#allocation6] sm:$0xff]
    %v147 = vld [vmem:[#allocation6 + $0x8] sm:$0xff]
    %v148 = vld [vmem:[#allocation6 + $0x10] sm:$0xff]
    %v149 = vld [vmem:[#allocation6 + $0x18] sm:$0xff]
    %v150 = vld [vmem:[#allocation6 + $0x20] sm:$0xff]
    %v151 = vld [vmem:[#allocation6 + $0x28] sm:$0xff]
    %v152 = vld [vmem:[#allocation6 + $0x30] sm:$0xff]
    %v153 = vld [vmem:[#allocation6 + $0x38] sm:$0xff]
    %v154 = vstv %s145
    %v155 = vmul.f32 %v154, %v146
    %v156 = vmul.f32 %v154, %v147
    %v157 = vmul.f32 %v154, %v148
    %v158 = vmul.f32 %v154, %v149
    %v159 = vmul.f32 %v154, %v150
    %v160 = vmul.f32 %v154, %v151
    %v161 = vmul.f32 %v154, %v152
    %v162 = vmul.f32 %v154, %v153
    %s163 = sld [smem:[#allocation2 + $0x81]]
    %v164 = vld [vmem:[%s56] sm:$0xff]
    %v165 = vld [vmem:[%s56 + $0x8] sm:$0xff]
    %v166 = vld [vmem:[%s56 + $0x10] sm:$0xff]
    %v167 = vld [vmem:[%s56 + $0x18] sm:$0xff]
    %v168 = vld [vmem:[%s56 + $0x20] sm:$0xff]
    %v169 = vld [vmem:[%s56 + $0x28] sm:$0xff]
    %v170 = vld [vmem:[%s56 + $0x30] sm:$0xff]
    %v171 = vld [vmem:[%s56 + $0x38] sm:$0xff]
    %v172 = vstv %s163
    %v173 = vmul.f32 %v172, %v164
    %v174 = vmul.f32 %v172, %v165
    %v175 = vmul.f32 %v172, %v166
    %v176 = vmul.f32 %v172, %v167
    %v177 = vmul.f32 %v172, %v168
    %v178 = vmul.f32 %v172, %v169
    %v179 = vmul.f32 %v172, %v170
    %v180 = vmul.f32 %v172, %v171
    %v181 = vadd.f32 %v155, %v173
    %v182 = vadd.f32 %v156, %v174
    %v183 = vadd.f32 %v157, %v175
    %v184 = vadd.f32 %v158, %v176
    %v185 = vadd.f32 %v159, %v177
    %v186 = vadd.f32 %v160, %v178
    %v187 = vadd.f32 %v161, %v179
    %v188 = vadd.f32 %v162, %v180
    %s189 = sld [smem:[#allocation2 + $0x82]]
    %v190 = vld [vmem:[%s83] sm:$0xff]
    %v191 = vld [vmem:[%s83 + $0x8] sm:$0xff]
    %v192 = vld [vmem:[%s83 + $0x10] sm:$0xff]
    %v193 = vld [vmem:[%s83 + $0x18] sm:$0xff]
    %v194 = vld [vmem:[%s83 + $0x20] sm:$0xff]
    %v195 = vld [vmem:[%s83 + $0x28] sm:$0xff]
    %v196 = vld [vmem:[%s83 + $0x30] sm:$0xff]
    %v197 = vld [vmem:[%s83 + $0x38] sm:$0xff]
    %v198 = vstv %s189
    %v199 = vmul.f32 %v198, %v190
    %v200 = vmul.f32 %v198, %v191
    %v201 = vmul.f32 %v198, %v192
    %v202 = vmul.f32 %v198, %v193
    %v203 = vmul.f32 %v198, %v194
    %v204 = vmul.f32 %v198, %v195
    %v205 = vmul.f32 %v198, %v196
    %v206 = vmul.f32 %v198, %v197
    %v207 = vadd.f32 %v181, %v199
    %v208 = vadd.f32 %v182, %v200
    %v209 = vadd.f32 %v183, %v201
    %v210 = vadd.f32 %v184, %v202
    %v211 = vadd.f32 %v185, %v203
    %v212 = vadd.f32 %v186, %v204
    %v213 = vadd.f32 %v187, %v205
    %v214 = vadd.f32 %v188, %v206
    %s215 = sld [smem:[#allocation2 + $0x83]]
    %v216 = vld [vmem:[%s110] sm:$0xff]
    %v217 = vld [vmem:[%s110 + $0x8] sm:$0xff]
    %v218 = vld [vmem:[%s110 + $0x10] sm:$0xff]
    %v219 = vld [vmem:[%s110 + $0x18] sm:$0xff]
    %v220 = vld [vmem:[%s110 + $0x20] sm:$0xff]
    %v221 = vld [vmem:[%s110 + $0x28] sm:$0xff]
    %v222 = vld [vmem:[%s110 + $0x30] sm:$0xff]
    %v223 = vld [vmem:[%s110 + $0x38] sm:$0xff]
    %v224 = vstv %s215
    %v225 = vmul.f32 %v224, %v216
    %v226 = vmul.f32 %v224, %v217
    %v227 = vmul.f32 %v224, %v218
    %v228 = vmul.f32 %v224, %v219
    %v229 = vmul.f32 %v224, %v220
    %v230 = vmul.f32 %v224, %v221
    %v231 = vmul.f32 %v224, %v222
    %v232 = vmul.f32 %v224, %v223
    %v233 = vadd.f32 %v207, %v225
    %v234 = vadd.f32 %v208, %v226
    %v235 = vadd.f32 %v209, %v227
    %v236 = vadd.f32 %v210, %v228
    %v237 = vadd.f32 %v211, %v229
    %v238 = vadd.f32 %v212, %v230
    %v239 = vadd.f32 %v213, %v231
    %v240 = vadd.f32 %v214, %v232
    %s241 = scalar_lea.vmem [#allocation7], 64
    %242 = vst.msk [vmem:[%s241] sm:$0xff] %vm136, %v233
    %243 = vst.msk [vmem:[%s241 + $0x8] sm:$0xff] %vm136, %v234
    %244 = vst.msk [vmem:[%s241 + $0x10] sm:$0xff] %vm136, %v235
    %245 = vst.msk [vmem:[%s241 + $0x18] sm:$0xff] %vm136, %v236
    %246 = vst.msk [vmem:[%s241 + $0x20] sm:$0xff] %vm136, %v237
    %247 = vst.msk [vmem:[%s241 + $0x28] sm:$0xff] %vm136, %v238
    %248 = vst.msk [vmem:[%s241 + $0x30] sm:$0xff] %vm136, %v239
    %249 = vst.msk [vmem:[%s241 + $0x38] sm:$0xff] %vm136, %v240
    // Predicated region
    $region18: #{tpu_custom_call.1} parent=1 // pred_check
      _
    $region19: #{tpu_custom_call.1} parent=1 // pred_check_branch
      %251 = sbr.rel (0) target = $region21
    $region20: #{tpu_custom_call.1} parent=1 // pred_region
      %s253 = ssub.s32 2048, 2048
      %254 = vsyncadd [#allocation4], %s253
      %s255 = sshll.u32 [#allocation7], 4
      %s256 = int_to_ptr.vmem [resolvable:$true] %s255
      %261 = dma.vmem_to_hbm [thread:$0]  %s256, 2048, %s2, [#allocation4], 128, 128, 8
    $region21: #{tpu_custom_call.1} parent=1 // pred_fallthru
      _
    // Predicated region
    $region22: #{tpu_custom_call.1} parent=1 // pred_check
      _
    $region23: #{tpu_custom_call.1} parent=1 // pred_check_branch
      %263 = sbr.rel (0) target = $region25
    $region24: #{tpu_custom_call.1} parent=1 // pred_region
      %264 = dma.done [#allocation4], 2048
    $region25: #{tpu_custom_call.1} parent=1 // pred_fallthru
      _
    %265 = vsyncpa [#allocation3], 1
    %266 = vsyncpa [#allocation4], 1
    %267 = vsyncpa [#allocation5], 1

</llo_original>
